<compile_context>
chip_gen: v5e
topology: v5e:2x2
jax: 0.10.0
libtpu: 0.0.40
codegen_flags: <defaults>
</compile_context>

<pallas_src>
import functools

import jax
import jax.numpy as jnp
from jax.experimental import pallas as pl
from jax.experimental.pallas import tpu as pltpu

CONCEPT_DIM = 312            # hard-coded in the PyTorch module (expand(-1, 312))
_SCALE = 1.0 / 4e-05         # ss_concept_loss.scale
_NORM_EPS = 1e-12            # F.normalize default eps


def _row_logsumexp(x):
    m = jnp.max(x, axis=-1, keepdims=True)
    return jnp.log(jnp.sum(jnp.exp(x - m), axis=-1, keepdims=True)) + m


def _row_softmax(x):
    # exact reciprocal of the (rows, 1) denominator (cheap), then broadcast mul
    m = jnp.max(x, axis=-1, keepdims=True)
    e = jnp.exp(x - m)
    return e * (1.0 / jnp.sum(e, axis=-1, keepdims=True))


def _normalize_rows(x):
    # F.normalize(x, dim=-1): x / max(||x||, eps) == x * rsqrt(max(||x||^2, eps^2))
    ssq = jnp.sum(x * x, axis=-1, keepdims=True)
    return x * jax.lax.rsqrt(jnp.maximum(ssq, _NORM_EPS * _NORM_EPS))


def _trinity_kernel(q_ref, k_ref, pc_ref, clab_ref, cls_ref, lab_ref, use_ref,
                    out_ref, *, tq):
    qi = pl.program_id(0)

    # ------------------- contrastive (CLIP) term -------------------
    # queries: (tq, D) bf16, pre-normalized; keys: (n_pairs, D) bf16, resident.
    a = q_ref[...]
    kv = k_ref[...]
    # logit_scale = 1.0 (temperature 1.0); bf16 in / f32 accumulate on the MXU.
    s = jax.lax.dot_general(a, kv, (((1,), (1,)), ((), ())),
                            preferred_element_type=jnp.float32)   # (tq, n_pairs)
    lse = _row_logsumexp(s)                                       # (tq, 1)

    # diagonal logit = dot(a_i, b_i) with the paired key row of this query tile
    # (row-wise dot against the resident key slice; no (B,B) iota/select/reduce).
    start = pl.multiple_of(qi * tq, tq)
    b_pair = k_ref[pl.ds(start, tq), :]                           # (tq, D) bf16
    diag = jnp.sum(a.astype(jnp.float32) * b_pair.astype(jnp.float32),
                   axis=-1, keepdims=True)
    c_part = jnp.sum(lse - diag, keepdims=True)                   # (1, 1)

    # ------------------- classification cross-entropy -------------------
    cl = cls_ref[...]                                             # (2*tq, C)
    lab = lab_ref[...]                                            # (2*tq, 1)
    cols = jax.lax.broadcasted_iota(jnp.int32, cl.shape, 1)
    picked = jnp.sum(jnp.where(cols == lab, cl, 0.0), axis=-1, keepdims=True)
    ce_part = jnp.sum(_row_logsumexp(cl) - picked, keepdims=True)  # (1, 1)

    # ------------------- concept L1 term -------------------
    # |scale*softmax(pc)*use - scale*softmax(clab)*use| summed per row, then a
    # single multiply by the non-negative factor (scale * use)  (exact).
    d = jnp.abs(_row_softmax(pc_ref[...]) - _row_softmax(clab_ref[...]))
    row_l1 = jnp.sum(d, axis=-1, keepdims=True)                   # (2*tq, 1)
    conc_part = jnp.sum(row_l1 * (_SCALE * use_ref[...]), keepdims=True)

    # lane-dense writeback: one unmasked (8, 128) f32 slab per query tile,
    # rows 0/1/2 carry the three per-tile partial sums.
    row_id = jax.lax.broadcasted_iota(jnp.int32, (8, 128), 0)
    slab = (jnp.where(row_id == 0, c_part, 0.0)
            + jnp.where(row_id == 1, ce_part, 0.0)
            + jnp.where(row_id == 2, conc_part, 0.0))
    out_ref[0] = slab


def _auto_tile(n_pairs, target=256):
    """Largest multiple-of-8 divisor of n_pairs that is <= target and (when
    possible) leaves nq >= 2 query tiles so both v7x TensorCores get work."""
    if n_pairs % 8 != 0:
        return n_pairs                      # single full-array tile (always legal)
    cap = min(target, n_pairs)
    if n_pairs >= 16:
        cap = min(cap, n_pairs // 2)        # guarantee nq >= 2 (megacore / 2 TC)
    cap = max(8, (cap // 8) * 8)
    t = cap
    while t >= 8:
        if n_pairs % t == 0:
            return t
        t -= 8
    return n_pairs


def trinity_loss(predicted_concepts, class_logits, class_label, concept_label,
                 use_concept_labels, *, tile_pairs=None):
    bs_2, dim = predicted_concepts.shape
    assert bs_2 % 2 == 0 and dim == CONCEPT_DIM
    n_pairs = bs_2 // 2
    num_classes = class_logits.shape[-1]

    tq = tile_pairs if tile_pairs is not None else _auto_tile(n_pairs)
    # guard the explicit tile_pairs path against layout-illegal blocks
    assert n_pairs % tq == 0 and (tq % 8 == 0 or tq == n_pairs)
    nq = n_pairs // tq

    # De-interleave the pair views once and pre-normalize the contrastive
    # operands (f32 math, bf16 storage): keys become a single full-resident
    # bf16 block (DMA'd once), queries stream per tile at half the f32 bytes.
    # TODO(synk): for very large n_pairs (>~8k) the resident bf16 key block /
    # (tq, n_pairs) logits tile would outgrow VMEM; that regime would need the
    # tiled-key online-logsumexp variant again.
    x = predicted_concepts.reshape(n_pairs, 2, dim)
    img1_n = _normalize_rows(x[:, 0, :]).astype(jnp.bfloat16)   # queries
    img2_n = _normalize_rows(x[:, 1, :]).astype(jnp.bfloat16)   # keys

    lab2 = class_label.astype(jnp.int32).reshape(bs_2, 1)
    use2 = use_concept_labels.astype(jnp.float32).reshape(bs_2, 1)

    kernel = functools.partial(_trinity_kernel, tq=tq)

    grid_spec = pltpu.PrefetchScalarGridSpec(
        num_scalar_prefetch=0,
        grid=(nq,),
        in_specs=[
            pl.BlockSpec((tq, dim), lambda q: (q, 0)),             # queries (bf16)
            pl.BlockSpec((n_pairs, dim), lambda q: (0, 0)),        # keys (bf16, resident)
            pl.BlockSpec((2 * tq, dim), lambda q: (q, 0)),         # predicted_concepts
            pl.BlockSpec((2 * tq, dim), lambda q: (q, 0)),         # concept_label
            pl.BlockSpec((2 * tq, num_classes), lambda q: (q, 0)), # class_logits
            pl.BlockSpec((2 * tq, 1), lambda q: (q, 0)),           # class_label
            pl.BlockSpec((2 * tq, 1), lambda q: (q, 0)),           # use mask
        ],
        out_specs=pl.BlockSpec((1, 8, 128), lambda q: (q, 0, 0)),  # per-tile partials
    )

    partials = pl.pallas_call(
        kernel,
        grid_spec=grid_spec,
        out_shape=jax.ShapeDtypeStruct((nq, 8, 128), jnp.float32),
        compiler_params=pltpu.CompilerParams(
            dimension_semantics=("parallel",),
            vmem_limit_bytes=32 * 1024 * 1024),
    )(img1_n, img2_n, predicted_concepts, concept_label, class_logits,
      lab2, use2)

    # tiny wrapper-side reductions of the per-tile partial sums
    contrastive = jnp.sum(partials[:, 0, 0]) / n_pairs
    classification = jnp.sum(partials[:, 1, 0]) / bs_2
    concept = jnp.sum(partials[:, 2, 0]) / (bs_2 * dim)
    return contrastive, classification, concept


def _reference(pc, cl, ylab, clab, use):
    bs_2, D = pc.shape
    B = bs_2 // 2
    x = pc.reshape(B, 2, D)
    a = x[:, 0, :]
    b = x[:, 1, :]
    a = a / jnp.maximum(jnp.linalg.norm(a, axis=-1, keepdims=True), 1e-12)
    b = b / jnp.maximum(jnp.linalg.norm(b, axis=-1, keepdims=True), 1e-12)
    logits = a @ b.T
    contrast = jnp.mean(jax.nn.logsumexp(logits, -1)
                        - logits[jnp.arange(B), jnp.arange(B)])
    classif = jnp.mean(jax.nn.logsumexp(cl, -1) - cl[jnp.arange(bs_2), ylab])
    scale = 1.0 / 4e-05
    npred = scale * jax.nn.softmax(pc, -1) * use[:, None]
    nlab = scale * jax.nn.softmax(clab, -1) * use[:, None]
    concept = jnp.mean(jnp.abs(npred - nlab))
    return contrast, classif, concept


if __name__ == "__main__":
    key = jax.random.PRNGKey(0)
    n_pairs = 16           # number of image pairs
    bs_2 = 2 * n_pairs     # batch seen by the loss
    D = CONCEPT_DIM        # 312, hard-coded by the module
    C = 16                 # number of classes (small)

    k1, k2, k3, k4, k5 = jax.random.split(key, 5)
    predicted_concepts = jax.random.normal(k1, (bs_2, D), jnp.float32)
    class_logits = jax.random.normal(k2, (bs_2, C), jnp.float32)
    class_label = jax.random.randint(k3, (bs_2,), 0, C, jnp.int32)
    concept_label = jax.random.normal(k4, (bs_2, D), jnp.float32)
    use_concept_labels = (jax.random.uniform(k5, (bs_2,)) > 0.5).astype(jnp.float32)

    # auto tile -> tq=8, grid (2,): exercises the multi-tile "parallel" path,
    # the resident-key block, and the per-tile partial-sum outputs.
    out = trinity_loss(predicted_concepts, class_logits, class_label,
                       concept_label, use_concept_labels)
    out = jax.block_until_ready(out)

    ref = _reference(predicted_concepts, class_logits, class_label,
                     concept_label, use_concept_labels)

    # Per-term tolerances: contrastive uses bf16 MXU inputs; classification and
    # concept are pure-f32 (exact-divide softmax).
    tols = [(5e-3, 5e-3), (1e-4, 1e-4), (1e-3, 1e-3)]
    for got, want, (rt, at) in zip(out, ref, tols):
        assert jnp.allclose(got, want, rtol=rt, atol=at), (got, want)

    print("KERNEL_OK")
</pallas_src>

<mosaic_0001>
module attributes {stable_mosaic.version = 11 : i64} {
  func.func @_trinity_kernel(%arg0: i32, %arg1: memref<8x312xbf16, #tpu.memory_space<vmem>>, %arg2: memref<16x312xbf16, #tpu.memory_space<vmem>>, %arg3: memref<16x312xf32, #tpu.memory_space<vmem>>, %arg4: memref<16x312xf32, #tpu.memory_space<vmem>>, %arg5: memref<16x16xf32, #tpu.memory_space<vmem>>, %arg6: memref<16x1xi32, #tpu.memory_space<vmem>>, %arg7: memref<16x1xf32, #tpu.memory_space<vmem>>, %arg8: memref<1x8x128xf32, #tpu.memory_space<vmem>>) attributes {dimension_semantics = [#tpu.dimension_semantics<parallel>], iteration_bounds = array<i64: 2>, scalar_prefetch = 0 : i64, scratch_operands = 0 : i64, tpu.core_type = #tpu.core_type<tc>, window_params = [{transform_indices = @transform_0, window_bounds = array<i64: 8, 312>}, {pipeline_mode = #tpu.pipeline_mode<synchronous>, transform_indices = @transform_1, window_bounds = array<i64: 16, 312>}, {transform_indices = @transform_2, window_bounds = array<i64: 16, 312>}, {transform_indices = @transform_3, window_bounds = array<i64: 16, 312>}, {transform_indices = @transform_4, window_bounds = array<i64: 16, 16>}, {transform_indices = @transform_5, window_bounds = array<i64: 16, 1>}, {transform_indices = @transform_6, window_bounds = array<i64: 16, 1>}, {transform_indices = @transform_7, window_bounds = array<i64: 1, 8, 128>}]} {
    %c0 = arith.constant 0 : index
    %c0_0 = arith.constant 0 : index
    %0 = vector.load %arg1[%c0, %c0_0] : memref<8x312xbf16, #tpu.memory_space<vmem>>, vector<8x312xbf16>
    %c0_1 = arith.constant 0 : index
    %c0_2 = arith.constant 0 : index
    %1 = vector.load %arg2[%c0_1, %c0_2] : memref<16x312xbf16, #tpu.memory_space<vmem>>, vector<16x312xbf16>
    %cst = arith.constant dense<0.000000e+00> : vector<8x16xf32>
    %2 = tpu.matmul %0, %1, %cst {dimension_numbers = #tpu.dot_dimension_numbers<[1], [1], [0], [0], [0, 0, 1, 0], [], []>} : vector<8x312xbf16>, vector<16x312xbf16>, vector<8x16xf32> -> vector<8x16xf32>
    %cst_3 = arith.constant dense<0xFF800000> : vector<8xf32>
    %3 = vector.multi_reduction <maximumf>, %2, %cst_3 [1] : vector<8x16xf32> to vector<8xf32>
    %4 = vector.shape_cast %3 : vector<8xf32> to vector<8x1xf32>
    %5 = vector.broadcast %4 : vector<8x1xf32> to vector<8x16xf32>
    %6 = arith.subf %2, %5 : vector<8x16xf32>
    %7 = math.exp %6 : vector<8x16xf32>
    %cst_4 = arith.constant dense<0.000000e+00> : vector<8xf32>
    %8 = vector.multi_reduction <add>, %7, %cst_4 [1] : vector<8x16xf32> to vector<8xf32>
    %9 = vector.shape_cast %8 : vector<8xf32> to vector<8x1xf32>
    %10 = math.log %9 : vector<8x1xf32>
    %11 = arith.addf %10, %4 : vector<8x1xf32>
    %c8_i32 = arith.constant 8 : i32
    %12 = arith.muli %arg0, %c8_i32 : i32
    %13 = tpu.assume_multiple %12, 8 : i32
    %14 = arith.index_cast %13 : i32 to index
    %c0_5 = arith.constant 0 : index
    %15 = vector.load %arg2[%14, %c0_5] : memref<16x312xbf16, #tpu.memory_space<vmem>>, vector<8x312xbf16>
    %16 = arith.extf %0 : vector<8x312xbf16> to vector<8x312xf32>
    %17 = arith.extf %15 : vector<8x312xbf16> to vector<8x312xf32>
    %18 = arith.mulf %16, %17 : vector<8x312xf32>
    %cst_6 = arith.constant dense<0.000000e+00> : vector<8xf32>
    %19 = vector.multi_reduction <add>, %18, %cst_6 [1] : vector<8x312xf32> to vector<8xf32>
    %20 = vector.shape_cast %19 : vector<8xf32> to vector<8x1xf32>
    %21 = arith.subf %11, %20 : vector<8x1xf32>
    %22 = vector.shape_cast %21 : vector<8x1xf32> to vector<1x8x1xf32>
    %cst_7 = arith.constant dense<0.000000e+00> : vector<1xf32>
    %23 = vector.multi_reduction <add>, %22, %cst_7 [1, 2] : vector<1x8x1xf32> to vector<1xf32>
    %24 = vector.shape_cast %23 : vector<1xf32> to vector<1x1x1xf32>
    %25 = vector.extract %24[0, 0, 0] : f32 from vector<1x1x1xf32>
    %26 = vector.broadcast %25 : f32 to vector<1x1xf32>
    %c0_8 = arith.constant 0 : index
    %c0_9 = arith.constant 0 : index
    %27 = vector.load %arg5[%c0_8, %c0_9] : memref<16x16xf32, #tpu.memory_space<vmem>>, vector<16x16xf32>
    %c0_10 = arith.constant 0 : index
    %c0_11 = arith.constant 0 : index
    %28 = vector.load %arg6[%c0_10, %c0_11] : memref<16x1xi32, #tpu.memory_space<vmem>>, vector<16x1xi32>
    %29 = tpu.iota {dimensions = array<i32: 1>} : vector<16x16xi32>
    %30 = vector.broadcast %28 : vector<16x1xi32> to vector<16x16xi32>
    %31 = arith.cmpi eq, %29, %30 : vector<16x16xi32>
    %cst_12 = arith.constant 0.000000e+00 : f32
    %32 = vector.broadcast %cst_12 : f32 to vector<16x16xf32>
    %33 = arith.select %31, %27, %32 : vector<16x16xi1>, vector<16x16xf32>
    %cst_13 = arith.constant dense<0.000000e+00> : vector<16xf32>
    %34 = vector.multi_reduction <add>, %33, %cst_13 [1] : vector<16x16xf32> to vector<16xf32>
    %35 = vector.shape_cast %34 : vector<16xf32> to vector<16x1xf32>
    %cst_14 = arith.constant dense<0xFF800000> : vector<16xf32>
    %36 = vector.multi_reduction <maximumf>, %27, %cst_14 [1] : vector<16x16xf32> to vector<16xf32>
    %37 = vector.shape_cast %36 : vector<16xf32> to vector<16x1xf32>
    %38 = vector.broadcast %37 : vector<16x1xf32> to vector<16x16xf32>
    %39 = arith.subf %27, %38 : vector<16x16xf32>
    %40 = math.exp %39 : vector<16x16xf32>
    %cst_15 = arith.constant dense<0.000000e+00> : vector<16xf32>
    %41 = vector.multi_reduction <add>, %40, %cst_15 [1] : vector<16x16xf32> to vector<16xf32>
    %42 = vector.shape_cast %41 : vector<16xf32> to vector<16x1xf32>
    %43 = math.log %42 : vector<16x1xf32>
    %44 = arith.addf %43, %37 : vector<16x1xf32>
    %45 = arith.subf %44, %35 : vector<16x1xf32>
    %46 = vector.shape_cast %45 : vector<16x1xf32> to vector<1x16x1xf32>
    %cst_16 = arith.constant dense<0.000000e+00> : vector<1xf32>
    %47 = vector.multi_reduction <add>, %46, %cst_16 [1, 2] : vector<1x16x1xf32> to vector<1xf32>
    %48 = vector.shape_cast %47 : vector<1xf32> to vector<1x1x1xf32>
    %49 = vector.extract %48[0, 0, 0] : f32 from vector<1x1x1xf32>
    %50 = vector.broadcast %49 : f32 to vector<1x1xf32>
    %c0_17 = arith.constant 0 : index
    %c0_18 = arith.constant 0 : index
    %51 = vector.load %arg3[%c0_17, %c0_18] : memref<16x312xf32, #tpu.memory_space<vmem>>, vector<16x312xf32>
    %cst_19 = arith.constant dense<0xFF800000> : vector<16xf32>
    %52 = vector.multi_reduction <maximumf>, %51, %cst_19 [1] : vector<16x312xf32> to vector<16xf32>
    %53 = vector.shape_cast %52 : vector<16xf32> to vector<16x1xf32>
    %54 = vector.broadcast %53 : vector<16x1xf32> to vector<16x312xf32>
    %55 = arith.subf %51, %54 : vector<16x312xf32>
    %56 = math.exp %55 : vector<16x312xf32>
    %cst_20 = arith.constant dense<0.000000e+00> : vector<16xf32>
    %57 = vector.multi_reduction <add>, %56, %cst_20 [1] : vector<16x312xf32> to vector<16xf32>
    %58 = vector.shape_cast %57 : vector<16xf32> to vector<16x1xf32>
    %cst_21 = arith.constant 1.000000e+00 : f32
    %59 = vector.broadcast %cst_21 : f32 to vector<16x1xf32>
    %60 = arith.divf %59, %58 : vector<16x1xf32>
    %61 = vector.broadcast %60 : vector<16x1xf32> to vector<16x312xf32>
    %62 = arith.mulf %56, %61 : vector<16x312xf32>
    %c0_22 = arith.constant 0 : index
    %c0_23 = arith.constant 0 : index
    %63 = vector.load %arg4[%c0_22, %c0_23] : memref<16x312xf32, #tpu.memory_space<vmem>>, vector<16x312xf32>
    %cst_24 = arith.constant dense<0xFF800000> : vector<16xf32>
    %64 = vector.multi_reduction <maximumf>, %63, %cst_24 [1] : vector<16x312xf32> to vector<16xf32>
    %65 = vector.shape_cast %64 : vector<16xf32> to vector<16x1xf32>
    %66 = vector.broadcast %65 : vector<16x1xf32> to vector<16x312xf32>
    %67 = arith.subf %63, %66 : vector<16x312xf32>
    %68 = math.exp %67 : vector<16x312xf32>
    %cst_25 = arith.constant dense<0.000000e+00> : vector<16xf32>
    %69 = vector.multi_reduction <add>, %68, %cst_25 [1] : vector<16x312xf32> to vector<16xf32>
    %70 = vector.shape_cast %69 : vector<16xf32> to vector<16x1xf32>
    %cst_26 = arith.constant 1.000000e+00 : f32
    %71 = vector.broadcast %cst_26 : f32 to vector<16x1xf32>
    %72 = arith.divf %71, %70 : vector<16x1xf32>
    %73 = vector.broadcast %72 : vector<16x1xf32> to vector<16x312xf32>
    %74 = arith.mulf %68, %73 : vector<16x312xf32>
    %75 = arith.subf %62, %74 : vector<16x312xf32>
    %76 = math.absf %75 : vector<16x312xf32>
    %cst_27 = arith.constant dense<0.000000e+00> : vector<16xf32>
    %77 = vector.multi_reduction <add>, %76, %cst_27 [1] : vector<16x312xf32> to vector<16xf32>
    %78 = vector.shape_cast %77 : vector<16xf32> to vector<16x1xf32>
    %c0_28 = arith.constant 0 : index
    %c0_29 = arith.constant 0 : index
    %79 = vector.load %arg7[%c0_28, %c0_29] : memref<16x1xf32, #tpu.memory_space<vmem>>, vector<16x1xf32>
    %cst_30 = arith.constant 2.500000e+04 : f32
    %80 = vector.broadcast %cst_30 : f32 to vector<16x1xf32>
    %81 = arith.mulf %80, %79 : vector<16x1xf32>
    %82 = arith.mulf %78, %81 : vector<16x1xf32>
    %83 = vector.shape_cast %82 : vector<16x1xf32> to vector<1x16x1xf32>
    %cst_31 = arith.constant dense<0.000000e+00> : vector<1xf32>
    %84 = vector.multi_reduction <add>, %83, %cst_31 [1, 2] : vector<1x16x1xf32> to vector<1xf32>
    %85 = vector.shape_cast %84 : vector<1xf32> to vector<1x1x1xf32>
    %86 = vector.extract %85[0, 0, 0] : f32 from vector<1x1x1xf32>
    %87 = vector.broadcast %86 : f32 to vector<1x1xf32>
    %88 = tpu.iota {dimensions = array<i32: 0>} : vector<8x128xi32>
    %c0_i32 = arith.constant 0 : i32
    %89 = vector.broadcast %c0_i32 : i32 to vector<8x128xi32>
    %90 = arith.cmpi eq, %88, %89 : vector<8x128xi32>
    %cst_32 = arith.constant 0.000000e+00 : f32
    %91 = vector.shape_cast %26 : vector<1x1xf32> to vector<1x1xf32>
    %92 = vector.broadcast %91 : vector<1x1xf32> to vector<8x128xf32>
    %93 = vector.broadcast %cst_32 : f32 to vector<8x128xf32>
    %94 = arith.select %90, %92, %93 : vector<8x128xi1>, vector<8x128xf32>
    %c1_i32 = arith.constant 1 : i32
    %95 = vector.broadcast %c1_i32 : i32 to vector<8x128xi32>
    %96 = arith.cmpi eq, %88, %95 : vector<8x128xi32>
    %cst_33 = arith.constant 0.000000e+00 : f32
    %97 = vector.shape_cast %50 : vector<1x1xf32> to vector<1x1xf32>
    %98 = vector.broadcast %97 : vector<1x1xf32> to vector<8x128xf32>
    %99 = vector.broadcast %cst_33 : f32 to vector<8x128xf32>
    %100 = arith.select %96, %98, %99 : vector<8x128xi1>, vector<8x128xf32>
    %101 = arith.addf %94, %100 : vector<8x128xf32>
    %c2_i32 = arith.constant 2 : i32
    %102 = vector.broadcast %c2_i32 : i32 to vector<8x128xi32>
    %103 = arith.cmpi eq, %88, %102 : vector<8x128xi32>
    %cst_34 = arith.constant 0.000000e+00 : f32
    %104 = vector.shape_cast %87 : vector<1x1xf32> to vector<1x1xf32>
    %105 = vector.broadcast %104 : vector<1x1xf32> to vector<8x128xf32>
    %106 = vector.broadcast %cst_34 : f32 to vector<8x128xf32>
    %107 = arith.select %103, %105, %106 : vector<8x128xi1>, vector<8x128xf32>
    %108 = arith.addf %101, %107 : vector<8x128xf32>
    %c0_35 = arith.constant 0 : index
    %c0_36 = arith.constant 0 : index
    %c0_37 = arith.constant 0 : index
    %109 = vector.load %arg8[%c0_35, %c0_36, %c0_37] : memref<1x8x128xf32, #tpu.memory_space<vmem>>, vector<1x8x128xf32>
    %110 = vector.shape_cast %109 : vector<1x8x128xf32> to vector<8x128xf32>
    %111 = vector.shape_cast %108 : vector<8x128xf32> to vector<1x8x128xf32>
    tpu.vector_store %arg8[%c0_35, %c0_36, %c0_37], %111 {strides = array<i32>} : memref<1x8x128xf32, #tpu.memory_space<vmem>>, vector<1x8x128xf32>,
    return
  }
  func.func @transform_0(%arg0: i32) -> (i32, i32) {
    %c0_i32 = arith.constant 0 : i32
    %c0_i32_0 = arith.constant 0 : i32
    return %arg0, %c0_i32 : i32, i32
  }
  func.func @transform_1(%arg0: i32) -> (i32, i32) {
    %c0_i32 = arith.constant 0 : i32
    %c0_i32_0 = arith.constant 0 : i32
    %c0_i32_1 = arith.constant 0 : i32
    return %c0_i32, %c0_i32_0 : i32, i32
  }
  func.func @transform_2(%arg0: i32) -> (i32, i32) {
    %c0_i32 = arith.constant 0 : i32
    %c0_i32_0 = arith.constant 0 : i32
    return %arg0, %c0_i32 : i32, i32
  }
  func.func @transform_3(%arg0: i32) -> (i32, i32) {
    %c0_i32 = arith.constant 0 : i32
    %c0_i32_0 = arith.constant 0 : i32
    return %arg0, %c0_i32 : i32, i32
  }
  func.func @transform_4(%arg0: i32) -> (i32, i32) {
    %c0_i32 = arith.constant 0 : i32
    %c0_i32_0 = arith.constant 0 : i32
    return %arg0, %c0_i32 : i32, i32
  }
  func.func @transform_5(%arg0: i32) -> (i32, i32) {
    %c0_i32 = arith.constant 0 : i32
    %c0_i32_0 = arith.constant 0 : i32
    return %arg0, %c0_i32 : i32, i32
  }
  func.func @transform_6(%arg0: i32) -> (i32, i32) {
    %c0_i32 = arith.constant 0 : i32
    %c0_i32_0 = arith.constant 0 : i32
    return %arg0, %c0_i32 : i32, i32
  }
  func.func @transform_7(%arg0: i32) -> (i32, i32, i32) {
    %c0_i32 = arith.constant 0 : i32
    %c0_i32_0 = arith.constant 0 : i32
    %c0_i32_1 = arith.constant 0 : i32
    return %arg0, %c0_i32, %c0_i32_0 : i32, i32, i32
  }
}

</mosaic_0001>

<llo_original>
// kernel: tpu_custom_call.1
$region0: #{tpu_custom_call.1}
  #allocation0 [shape = 'u32[]', space=smem, size = 0x4, offset = 0x4, fixed_abs, tag = 'smem constant byte address 0x4 - core index']
  #allocation1 [shape = 'u32[72,128]{1,0:T(1,128)}', space=vmem, size = 0x9000, scoped, tag = 'internal scratch']
  %s0 = inlined_call_operand.vmem [shape: bf16[16,312], index: 0, kind: input, shape index: {}]
  %s1 = inlined_call_operand.vmem [shape: bf16[16,312], index: 1, kind: input, shape index: {}]
  %s2 = inlined_call_operand.hbm [shape: f32[32,312], index: 2, kind: input, shape index: {}]
  %s3 = inlined_call_operand.hbm [shape: f32[32,312], index: 3, kind: input, shape index: {}]
  %s4 = inlined_call_operand.vmem [shape: f32[32,16], index: 4, kind: input, shape index: {}]
  %s5 = inlined_call_operand.vmem [shape: s32[32,1], index: 5, kind: input, shape index: {}]
  %s6 = inlined_call_operand.vmem [shape: f32[32,1], index: 6, kind: input, shape index: {}]
  %s7 = inlined_call_operand.hbm [shape: f32[2,8,128], index: 7, kind: output, shape index: {}]
  %s8 = sld [smem:[#allocation0]]
  $region69: #{tpu_custom_call.1} parent=0
    _
  %s10 = ssub.s32 1, %s8
  %s11 = scalar_select 0, %s10, %s8
  $region1: #{tpu_custom_call.1} parent=0
    #allocation2 [shape = 'u8[49152]{0}', space=vmem, size = 0xc000, scoped, tag = 'input window, operand 2']
    #allocation3 [shape = 's32[2]{0}', space=sflag, size = 0x8, scoped, tag = 'scoped memory for tpu_custom_call.1']
    #allocation4 [shape = 's32[2]{0}', space=sflag, size = 0x8, scoped, tag = 'scoped memory for tpu_custom_call.1']
    #allocation5 [shape = 'u8[49152]{0}', space=vmem, size = 0xc000, scoped, tag = 'input window, operand 3']
    #allocation6 [shape = 's32[2]{0}', space=sflag, size = 0x8, scoped, tag = 'scoped memory for tpu_custom_call.1']
    #allocation7 [shape = 'u8[8192]{0}', space=vmem, size = 0x2000, scoped, tag = 'output window, operand 0']
    %12 = vsyncpa [#allocation3], 0
    %s13 = scalar_lea.sflag [#allocation3], 1
    %14 = vsyncpa %s13, 0
    %15 = vsyncpa [#allocation6], 0
    %s16 = scalar_lea.sflag [#allocation6], 1
    %17 = vsyncpa %s16, 0
    %18 = vsyncpa [#allocation4], 0
    %s19 = scalar_lea.sflag [#allocation4], 1
    %20 = vsyncpa %s19, 0
    loop: start=0, step=1, limit=4
    $region2: #{tpu_custom_call.1} parent=1 // loop_pre_header
      _
    $region3: #{tpu_custom_call.1} parent=1 // loop_header
      %s22 = sphi 0, %s26
      %p23 = scmp.ge.s32.totalorder %s22, 4
      %s32 = sphi 0, %s34
      %s35 = sphi 0, %s32
      %s36 = sphi 0, %s35
      %s52 = sphi 0, %s36
      %s56 = sphi 0, %s56
      %s58 = sphi 0, %s56
      %s59 = sphi 0, %s58
      %s73 = sphi 0, %s59
      %s79 = sphi 0, %s81
      %s82 = sphi 0, %s79
      %s83 = sphi 0, %s82
      %s99 = sphi 0, %s83
      %s105 = sphi 0, %s107
      %s108 = sphi 0, %s105
      %s109 = sphi 0, %s108
      %s125 = sphi 0, %s109
      %s131 = sphi 0, %s133
      %s134 = sphi 0, %s131
      %s135 = sphi 0, %s134
      %s151 = sphi 0, %s135
      %s157 = sphi 0, %s159
      %s160 = sphi 0, %s157
      %s161 = sphi 0, %s160
      %s177 = sphi 0, %s161
      %s183 = sphi 0, %s185
      %s186 = sphi 0, %s183
      %s187 = sphi 0, %s186
      %s203 = sphi 0, %s187
      %s209 = sphi 0, %s211
      %s212 = sphi 0, %s209
      %s213 = sphi 0, %s212
      %s229 = sphi 0, %s213
    $region4: #{tpu_custom_call.1} parent=1 // loop_header_branch
      %25 = sbr.rel (%p23) target = $region8
    $region5: #{tpu_custom_call.1} parent=1 // loop_body
      %s27 = ssub.s32 %s22, 1
      %s28 = ssub.s32 %s22, 2
      %s29 = sadd.s32 %s22, 1
      %s30 = ssub.s32 %s22, %s29
      %p31 = scmp.eq.s32.totalorder %s30, 0
      %s33 = sadd.s32 %s32, 1
      %s34 = scalar_select %p31, %s32, %s33
      %p37 = pneg %p31
      %p38 = scmp.eq.s32.totalorder %s22, 1
      %p39 = por %p37, %p38
      %p40 = scmp.ne.s32.totalorder %s32, %s35
      %p41 = scmp.eq.s32.totalorder %s22, 0
      %p42 = por %p40, %p41
      %p43 = scmp.ne.s32.totalorder %s32, %s35
      %p44 = scmp.eq.s32.totalorder %s27, 1
      %p45 = por %p43, %p44
      %p46 = scmp.ne.s32.totalorder %s35, %s36
      %p47 = scmp.eq.s32.totalorder %s27, 0
      %p48 = por %p46, %p47
      %p49 = scmp.ne.s32.totalorder %s35, %s36
      %p50 = scmp.eq.s32.totalorder %s28, 1
      %p51 = por %p49, %p50
      %p53 = scmp.ne.s32.totalorder %s36, %s52
      %p54 = scmp.eq.s32.totalorder %s28, 0
      %p55 = por %p53, %p54
      %s57 = sadd.s32 %s56, 1
      %p60 = scmp.eq.s32.totalorder %s22, 1
      %p61 = scmp.ne.s32.totalorder %s56, %s58
      %p62 = scmp.eq.s32.totalorder %s22, 0
      %p63 = por %p61, %p62
      %p64 = scmp.ne.s32.totalorder %s56, %s58
      %p65 = scmp.eq.s32.totalorder %s27, 1
      %p66 = por %p64, %p65
      %p67 = scmp.ne.s32.totalorder %s58, %s59
      %p68 = scmp.eq.s32.totalorder %s27, 0
      %p69 = por %p67, %p68
      %p70 = scmp.ne.s32.totalorder %s58, %s59
      %p71 = scmp.eq.s32.totalorder %s28, 1
      %p72 = por %p70, %p71
      %p74 = scmp.ne.s32.totalorder %s59, %s73
      %p75 = scmp.eq.s32.totalorder %s28, 0
      %p76 = por %p74, %p75
      %s77 = ssub.s32 %s22, %s29
      %p78 = scmp.eq.s32.totalorder %s77, 0
      %s80 = sadd.s32 %s79, 1
      %s81 = scalar_select %p78, %s79, %s80
      %p84 = pneg %p78
      %p85 = scmp.eq.s32.totalorder %s22, 1
      %p86 = por %p84, %p85
      %p87 = scmp.ne.s32.totalorder %s79, %s82
      %p88 = scmp.eq.s32.totalorder %s22, 0
      %p89 = por %p87, %p88
      %p90 = scmp.ne.s32.totalorder %s79, %s82
      %p91 = scmp.eq.s32.totalorder %s27, 1
      %p92 = por %p90, %p91
      %p93 = scmp.ne.s32.totalorder %s82, %s83
      %p94 = scmp.eq.s32.totalorder %s27, 0
      %p95 = por %p93, %p94
      %p96 = scmp.ne.s32.totalorder %s82, %s83
      %p97 = scmp.eq.s32.totalorder %s28, 1
      %p98 = por %p96, %p97
      %p100 = scmp.ne.s32.totalorder %s83, %s99
      %p101 = scmp.eq.s32.totalorder %s28, 0
      %p102 = por %p100, %p101
      %s103 = ssub.s32 %s22, %s29
      %p104 = scmp.eq.s32.totalorder %s103, 0
      %s106 = sadd.s32 %s105, 1
      %s107 = scalar_select %p104, %s105, %s106
      %p110 = pneg %p104
      %p111 = scmp.eq.s32.totalorder %s22, 1
      %p112 = por %p110, %p111
      %p113 = scmp.ne.s32.totalorder %s105, %s108
      %p114 = scmp.eq.s32.totalorder %s22, 0
      %p115 = por %p113, %p114
      %p116 = scmp.ne.s32.totalorder %s105, %s108
      %p117 = scmp.eq.s32.totalorder %s27, 1
      %p118 = por %p116, %p117
      %p119 = scmp.ne.s32.totalorder %s108, %s109
      %p120 = scmp.eq.s32.totalorder %s27, 0
      %p121 = por %p119, %p120
      %p122 = scmp.ne.s32.totalorder %s108, %s109
      %p123 = scmp.eq.s32.totalorder %s28, 1
      %p124 = por %p122, %p123
      %p126 = scmp.ne.s32.totalorder %s109, %s125
      %p127 = scmp.eq.s32.totalorder %s28, 0
      %p128 = por %p126, %p127
      %s129 = ssub.s32 %s22, %s29
      %p130 = scmp.eq.s32.totalorder %s129, 0
      %s132 = sadd.s32 %s131, 1
      %s133 = scalar_select %p130, %s131, %s132
      %p136 = pneg %p130
      %p137 = scmp.eq.s32.totalorder %s22, 1
      %p138 = por %p136, %p137
      %p139 = scmp.ne.s32.totalorder %s131, %s134
      %p140 = scmp.eq.s32.totalorder %s22, 0
      %p141 = por %p139, %p140
      %p142 = scmp.ne.s32.totalorder %s131, %s134
      %p143 = scmp.eq.s32.totalorder %s27, 1
      %p144 = por %p142, %p143
      %p145 = scmp.ne.s32.totalorder %s134, %s135
      %p146 = scmp.eq.s32.totalorder %s27, 0
      %p147 = por %p145, %p146
      %p148 = scmp.ne.s32.totalorder %s134, %s135
      %p149 = scmp.eq.s32.totalorder %s28, 1
      %p150 = por %p148, %p149
      %p152 = scmp.ne.s32.totalorder %s135, %s151
      %p153 = scmp.eq.s32.totalorder %s28, 0
      %p154 = por %p152, %p153
      %s155 = ssub.s32 %s22, %s29
      %p156 = scmp.eq.s32.totalorder %s155, 0
      %s158 = sadd.s32 %s157, 1
      %s159 = scalar_select %p156, %s157, %s158
      %p162 = pneg %p156
      %p163 = scmp.eq.s32.totalorder %s22, 1
      %p164 = por %p162, %p163
      %p165 = scmp.ne.s32.totalorder %s157, %s160
      %p166 = scmp.eq.s32.totalorder %s22, 0
      %p167 = por %p165, %p166
      %p168 = scmp.ne.s32.totalorder %s157, %s160
      %p169 = scmp.eq.s32.totalorder %s27, 1
      %p170 = por %p168, %p169
      %p171 = scmp.ne.s32.totalorder %s160, %s161
      %p172 = scmp.eq.s32.totalorder %s27, 0
      %p173 = por %p171, %p172
      %p174 = scmp.ne.s32.totalorder %s160, %s161
      %p175 = scmp.eq.s32.totalorder %s28, 1
      %p176 = por %p174, %p175
      %p178 = scmp.ne.s32.totalorder %s161, %s177
      %p179 = scmp.eq.s32.totalorder %s28, 0
      %p180 = por %p178, %p179
      %s181 = ssub.s32 %s22, %s29
      %p182 = scmp.eq.s32.totalorder %s181, 0
      %s184 = sadd.s32 %s183, 1
      %s185 = scalar_select %p182, %s183, %s184
      %p188 = pneg %p182
      %p189 = scmp.eq.s32.totalorder %s22, 1
      %p190 = por %p188, %p189
      %p191 = scmp.ne.s32.totalorder %s183, %s186
      %p192 = scmp.eq.s32.totalorder %s22, 0
      %p193 = por %p191, %p192
      %p194 = scmp.ne.s32.totalorder %s183, %s186
      %p195 = scmp.eq.s32.totalorder %s27, 1
      %p196 = por %p194, %p195
      %p197 = scmp.ne.s32.totalorder %s186, %s187
      %p198 = scmp.eq.s32.totalorder %s27, 0
      %p199 = por %p197, %p198
      %p200 = scmp.ne.s32.totalorder %s186, %s187
      %p201 = scmp.eq.s32.totalorder %s28, 1
      %p202 = por %p200, %p201
      %p204 = scmp.ne.s32.totalorder %s187, %s203
      %p205 = scmp.eq.s32.totalorder %s28, 0
      %p206 = por %p204, %p205
      %s207 = ssub.s32 %s22, %s29
      %p208 = scmp.eq.s32.totalorder %s207, 0
      %s210 = sadd.s32 %s209, 1
      %s211 = scalar_select %p208, %s209, %s210
      %p214 = pneg %p208
      %p215 = scmp.eq.s32.totalorder %s22, 1
      %p216 = por %p214, %p215
      %p217 = scmp.ne.s32.totalorder %s209, %s212
      %p218 = scmp.eq.s32.totalorder %s22, 0
      %p219 = por %p217, %p218
      %p220 = scmp.ne.s32.totalorder %s209, %s212
      %p221 = scmp.eq.s32.totalorder %s27, 1
      %p222 = por %p220, %p221
      %p223 = scmp.ne.s32.totalorder %s212, %s213
      %p224 = scmp.eq.s32.totalorder %s27, 0
      %p225 = por %p223, %p224
      %p226 = scmp.ne.s32.totalorder %s212, %s213
      %p227 = scmp.eq.s32.totalorder %s28, 1
      %p228 = por %p226, %p227
      %p230 = scmp.ne.s32.totalorder %s213, %s229
      %p231 = scmp.eq.s32.totalorder %s28, 0
      %p232 = por %p230, %p231
      %p233 = scmp.le.s32.totalorder 1, %s22
      %p234 = scmp.lt.s32.totalorder %s22, 3
      %p235 = pnand %p233, %p234
      %p236 = pneg %p235
      // Predicated region
      $region9: #{tpu_custom_call.1} parent=5 // pred_check
        _
      $region10: #{tpu_custom_call.1} parent=5 // pred_check_branch
        %238 = sbr.rel (%p235) target = $region12
      $region11: #{tpu_custom_call.1} parent=5 // pred_region
        %s239 = ssub.s32 %s22, 1
        // Predicated region
        $region13: #{tpu_custom_call.1} parent=11 // pred_check
          %p240 = pneg %p69
        $region14: #{tpu_custom_call.1} parent=11 // pred_check_branch
          %242 = sbr.rel (%p240) target = $region16
        $region15: #{tpu_custom_call.1} parent=11 // pred_region
          _
        $region16: #{tpu_custom_call.1} parent=11 // pred_fallthru
          _
      $region12: #{tpu_custom_call.1} parent=5 // pred_fallthru
        _
      %p243 = scmp.lt.s32.totalorder %s22, 2
      // Predicated region
      $region17: #{tpu_custom_call.1} parent=5 // pred_check
        %p244 = pneg %p243
      $region18: #{tpu_custom_call.1} parent=5 // pred_check_branch
        %246 = sbr.rel (%p244) target = $region20
      $region19: #{tpu_custom_call.1} parent=5 // pred_region
        // Predicated region
        $region21: #{tpu_custom_call.1} parent=19 // pred_check
          %p247 = pneg %p42
        $region22: #{tpu_custom_call.1} parent=19 // pred_check_branch
          %249 = sbr.rel (%p247) target = $region24
        $region23: #{tpu_custom_call.1} parent=19 // pred_region
          %p250 = scmp.lt.s32.totalorder %s22, 1
          %s251 = scalar_select %p250, %s22, 1
          %s252 = smul.addr %s251, 3
          %s253 = smul.addr %s252, 4
          %s254 = scalar_lea.vmem %s0, %s253
        $region24: #{tpu_custom_call.1} parent=19 // pred_fallthru
          _
        // Predicated region
        $region25: #{tpu_custom_call.1} parent=19 // pred_check
          %p255 = pneg %p89
        $region26: #{tpu_custom_call.1} parent=19 // pred_check_branch
          %257 = sbr.rel (%p255) target = $region28
        $region27: #{tpu_custom_call.1} parent=19 // pred_region
          %s258 = sand.u32 %s79, 1
          %s259 = scalar_lea.sflag [#allocation3], %s258
          %s260 = sand.u32 %s79, 1
          %s261 = smul.addr %s260, 48
          %s262 = scalar_lea.vmem [#allocation2], %s261
          %s263 = smul.u32 2, %s22
          %265 = vsyncadd %s259, 0
          %s266 = smul.addr %s263, 3
          %s267 = smul.addr %s266, 8
          %s268 = scalar_lea.hbm %s2, %s267
          %s269 = sshll.u32 %s268, 4
          %s270 = int_to_ptr.hbm [resolvable:$true] %s269
          %s271 = sshll.u32 %s262, 4
          %s272 = int_to_ptr.vmem [resolvable:$true] %s271
          %277 = dma.hbm_to_vmem [thread:$0]  %s270, 768, %s272, %s259, 384, 384, 24
        $region28: #{tpu_custom_call.1} parent=19 // pred_fallthru
          _
        // Predicated region
        $region29: #{tpu_custom_call.1} parent=19 // pred_check
          %p278 = pneg %p115
        $region30: #{tpu_custom_call.1} parent=19 // pred_check_branch
          %280 = sbr.rel (%p278) target = $region32
        $region31: #{tpu_custom_call.1} parent=19 // pred_region
          %s281 = sand.u32 %s105, 1
          %s282 = scalar_lea.sflag [#allocation6], %s281
          %s283 = sand.u32 %s105, 1
          %s284 = smul.addr %s283, 48
          %s285 = scalar_lea.vmem [#allocation5], %s284
          %s286 = smul.u32 2, %s22
          %288 = vsyncadd %s282, 0
          %s289 = smul.addr %s286, 3
          %s290 = smul.addr %s289, 8
          %s291 = scalar_lea.hbm %s3, %s290
          %s292 = sshll.u32 %s291, 4
          %s293 = int_to_ptr.hbm [resolvable:$true] %s292
          %s294 = sshll.u32 %s285, 4
          %s295 = int_to_ptr.vmem [resolvable:$true] %s294
          %300 = dma.hbm_to_vmem [thread:$0]  %s293, 768, %s295, %s282, 384, 384, 24
        $region32: #{tpu_custom_call.1} parent=19 // pred_fallthru
          _
        // Predicated region
        $region33: #{tpu_custom_call.1} parent=19 // pred_check
          %p301 = pneg %p141
        $region34: #{tpu_custom_call.1} parent=19 // pred_check_branch
          %303 = sbr.rel (%p301) target = $region36
        $region35: #{tpu_custom_call.1} parent=19 // pred_region
          %s304 = smul.u32 2, %s22
          %p305 = scmp.lt.s32.totalorder %s304, 3
          %s306 = scalar_select %p305, %s304, 3
          %s307 = smul.addr %s306, 8
          %s308 = scalar_lea.vmem %s4, %s307
          %s309 = smul.u32 2, %s22
        $region36: #{tpu_custom_call.1} parent=19 // pred_fallthru
          _
        // Predicated region
        $region37: #{tpu_custom_call.1} parent=19 // pred_check
          %p310 = pneg %p167
        $region38: #{tpu_custom_call.1} parent=19 // pred_check_branch
          %312 = sbr.rel (%p310) target = $region40
        $region39: #{tpu_custom_call.1} parent=19 // pred_region
          %s313 = smul.u32 2, %s22
          %p314 = scmp.lt.s32.totalorder %s313, 3
          %s315 = scalar_select %p314, %s313, 3
          %s316 = smul.addr %s315, 8
          %s317 = scalar_lea.vmem %s5, %s316
          %s318 = smul.u32 2, %s22
        $region40: #{tpu_custom_call.1} parent=19 // pred_fallthru
          _
        // Predicated region
        $region41: #{tpu_custom_call.1} parent=19 // pred_check
          %p319 = pneg %p193
        $region42: #{tpu_custom_call.1} parent=19 // pred_check_branch
          %321 = sbr.rel (%p319) target = $region44
        $region43: #{tpu_custom_call.1} parent=19 // pred_region
          %s322 = smul.u32 2, %s22
          %p323 = scmp.lt.s32.totalorder %s322, 3
          %s324 = scalar_select %p323, %s322, 3
          %s325 = smul.addr %s324, 8
          %s326 = scalar_lea.vmem %s6, %s325
          %s327 = smul.u32 2, %s22
        $region44: #{tpu_custom_call.1} parent=19 // pred_fallthru
          _
      $region20: #{tpu_custom_call.1} parent=5 // pred_fallthru
        _
      %p328 = scmp.le.s32.totalorder 1, %s22
      %p329 = scmp.lt.s32.totalorder %s22, 3
      %p330 = pnand %p328, %p329
      %p331 = pneg %p330
      // Predicated region
      $region45: #{tpu_custom_call.1} parent=5 // pred_check
        _
      $region46: #{tpu_custom_call.1} parent=5 // pred_check_branch
        %333 = sbr.rel (%p330) target = $region48
      $region47: #{tpu_custom_call.1} parent=5 // pred_region
        %s334 = ssub.s32 %s22, 1
        %s335 = sand.u32 %s82, 1
        %s336 = scalar_lea.sflag [#allocation3], %s335
        %s337 = sand.u32 %s82, 1
        %s338 = smul.addr %s337, 48
        %s339 = scalar_lea.vmem [#allocation2], %s338
        // Predicated region
        $region49: #{tpu_custom_call.1} parent=47 // pred_check
          %p340 = pneg %p95
        $region50: #{tpu_custom_call.1} parent=47 // pred_check_branch
          %342 = sbr.rel (%p340) target = $region52
        $region51: #{tpu_custom_call.1} parent=47 // pred_region
          %344 = dma.done %s336, 768
        $region52: #{tpu_custom_call.1} parent=47 // pred_fallthru
          _
        %s345 = sand.u32 %s108, 1
        %s346 = scalar_lea.sflag [#allocation6], %s345
        %s347 = sand.u32 %s108, 1
        %s348 = smul.addr %s347, 48
        %s349 = scalar_lea.vmem [#allocation5], %s348
        // Predicated region
        $region53: #{tpu_custom_call.1} parent=47 // pred_check
          %p350 = pneg %p121
        $region54: #{tpu_custom_call.1} parent=47 // pred_check_branch
          %352 = sbr.rel (%p350) target = $region56
        $region55: #{tpu_custom_call.1} parent=47 // pred_region
          %354 = dma.done %s346, 768
        $region56: #{tpu_custom_call.1} parent=47 // pred_fallthru
          _
        %p355 = scmp.lt.s32.totalorder %s27, 1
        %s356 = scalar_select %p355, %s27, 1
        %s357 = smul.addr %s356, 3
        %s358 = smul.addr %s357, 4
        %s359 = scalar_lea.vmem %s0, %s358
        %p360 = pneg %p48
        %p361 = pneg %p45
        %p362 = pneg %p69
        %p363 = pneg %p66
        %s364 = sand.u32 %s82, 1
        %s365 = scalar_lea.sflag [#allocation3], %s364
        %s366 = sand.u32 %s82, 1
        %s367 = smul.addr %s366, 48
        %s368 = scalar_lea.vmem [#allocation2], %s367
        %p369 = pneg %p95
        %p370 = pneg %p92
        %s371 = sand.u32 %s108, 1
        %s372 = scalar_lea.sflag [#allocation6], %s371
        %s373 = sand.u32 %s108, 1
        %s374 = smul.addr %s373, 48
        %s375 = scalar_lea.vmem [#allocation5], %s374
        %p376 = pneg %p121
        %p377 = pneg %p118
        %s378 = smul.u32 2, %s27
        %p379 = scmp.lt.s32.totalorder %s378, 3
        %s380 = scalar_select %p379, %s378, 3
        %s381 = smul.addr %s380, 8
        %s382 = scalar_lea.vmem %s4, %s381
        %p383 = pneg %p147
        %p384 = pneg %p144
        %s385 = smul.u32 2, %s27
        %p386 = scmp.lt.s32.totalorder %s385, 3
        %s387 = scalar_select %p386, %s385, 3
        %s388 = smul.addr %s387, 8
        %s389 = scalar_lea.vmem %s5, %s388
        %p390 = pneg %p173
        %p391 = pneg %p170
        %s392 = smul.u32 2, %s27
        %p393 = scmp.lt.s32.totalorder %s392, 3
        %s394 = scalar_select %p393, %s392, 3
        %s395 = smul.addr %s394, 8
        %s396 = scalar_lea.vmem %s6, %s395
        %p397 = pneg %p199
        %p398 = pneg %p196
        %p399 = pneg %p225
        %p400 = pneg %p222
        %s401 = sand.u32 %s212, 1
        %s402 = scalar_lea.sflag [#allocation4], %s401
        %s403 = sand.u32 %s212, 1
        %s404 = smul.addr %s403, 8
        %s405 = scalar_lea.vmem [#allocation7], %s404
        %p406 = scmp.lt.s32.totalorder %s27, 1
        %s407 = scalar_select %p406, %s27, 1
        %s408 = smul.addr %s407, 3
        %s409 = smul.addr %s408, 4
        %s410 = scalar_lea.vmem %s0, %s409
        %s411 = smul.u32 2, %s27
        %s412 = smul.u32 2, %s27
        %s413 = smul.u32 2, %s27
        %p414 = scmp.lt.s32.totalorder %s413, 3
        %s415 = scalar_select %p414, %s413, 3
        %s416 = smul.addr %s415, 8
        %s417 = scalar_lea.vmem %s4, %s416
        %s418 = smul.u32 2, %s27
        %s419 = smul.u32 2, %s27
        %p420 = scmp.lt.s32.totalorder %s419, 3
        %s421 = scalar_select %p420, %s419, 3
        %s422 = smul.addr %s421, 8
        %s423 = scalar_lea.vmem %s5, %s422
        %s424 = smul.u32 2, %s27
        %s425 = smul.u32 2, %s27
        %p426 = scmp.lt.s32.totalorder %s425, 3
        %s427 = scalar_select %p426, %s425, 3
        %s428 = smul.addr %s427, 8
        %s429 = scalar_lea.vmem %s6, %s428
        %s430 = smul.u32 2, %s27
        %v432 = vld [vmem:[%s410] sm:$0xff]
        %v433 = vld [vmem:[%s410 + $0x8] sm:$0xf]
        %v434 = vld [vmem:[%s1] sm:$0xff]
        %v435 = vld [vmem:[%s1 + $0x8] sm:$0xf]
        %v436 = vld [vmem:[%s1 + $0xc] sm:$0xff]
        %v437 = vld [vmem:[%s1 + $0x14] sm:$0xf]
        %v440 = vunpack.c.l.b16 %v432
        %v441 = vunpack.c.h.b16 %v432
        %v442 = vunpack.c.l.b16 %v433
        %v443 = vpack.c.b16 %v440, %v440
        %v444 = vpack.c.b16 %v441, %v441
        %v445 = vpack.c.b16 %v442, %v442
        %v452 = vunpack.c.l.b16 %v434
        %v453 = vunpack.c.h.b16 %v434
        %v454 = vunpack.c.l.b16 %v435
        %v455 = vunpack.c.l.b16 %v436
        %v456 = vunpack.c.h.b16 %v436
        %v457 = vunpack.c.l.b16 %v437
        %v458 = vpack.c.b16 %v455, %v452
        %v459 = vpack.c.b16 %v456, %v453
        %v460 = vpack.c.b16 %v457, %v454
        %vm463 = vcmask 457728
        %v465 = vsel %vm463, %v445, 0
        %v468 = vsel %vm463, %v460, 0
        %470 = vmatpush.bf16.xpose.msra.mxu0 0
        %471 = vmatpush.bf16.xpose.msra.mxu0 0
        %472 = vmatpush.bf16.xpose.msra.mxu0 0
        %473 = vmatpush.bf16.xpose.msra.mxu0 0
        %474 = vmatpush.bf16.xpose.msra.mxu0 0
        %475 = vmatpush.bf16.xpose.msra.mxu0 0
        %476 = vmatpush.bf16.xpose.msra.mxu0 0
        %477 = vmatpush.bf16.xpose.msra.mxu0 %v458
        %478 = vmatmul.bf16.gmra.mxu0 %v443
        %v479 = vpop.f32.mrf.mxu0
        %v480 = vadd.f32 0.0, %v479
        %v481 = vpop.f32.mrf.mxu0
        %482 = vdwg.mxu0
        %483 = vmatpush.bf16.xpose.msra.mxu0 0
        %484 = vmatpush.bf16.xpose.msra.mxu0 0
        %485 = vmatpush.bf16.xpose.msra.mxu0 0
        %486 = vmatpush.bf16.xpose.msra.mxu0 0
        %487 = vmatpush.bf16.xpose.msra.mxu0 0
        %488 = vmatpush.bf16.xpose.msra.mxu0 0
        %489 = vmatpush.bf16.xpose.msra.mxu0 0
        %490 = vmatpush.bf16.xpose.msra.mxu0 %v459
        %491 = vmatmul.bf16.gmra.mxu0 %v444
        %v492 = vpop.f32.mrf.mxu0
        %v493 = vadd.f32 %v480, %v492
        %v494 = vpop.f32.mrf.mxu0
        %495 = vdwg.mxu0
        %496 = vmatpush.bf16.xpose.msra.mxu0 0
        %497 = vmatpush.bf16.xpose.msra.mxu0 0
        %498 = vmatpush.bf16.xpose.msra.mxu0 0
        %499 = vmatpush.bf16.xpose.msra.mxu0 0
        %500 = vmatpush.bf16.xpose.msra.mxu0 0
        %501 = vmatpush.bf16.xpose.msra.mxu0 0
        %502 = vmatpush.bf16.xpose.msra.mxu0 0
        %503 = vmatpush.bf16.xpose.msra.mxu0 %v468
        %504 = vmatmul.bf16.gmra.mxu0 %v465
        %v505 = vpop.f32.mrf.mxu0
        %v506 = vadd.f32 %v493, %v505
        %v507 = vpop.f32.mrf.mxu0
        %508 = vdwg.mxu0
        %vm509 = vcmask 130048
        %v510 = vsel %vm509, %v506, -inf
        %511 = vmax.xlane.f32.xlu0 %v510
        %v512 = vpop.xlane.xlu0 %511
        %v513 = vsub.f32 %v506, %v512
        %v514 = vmul.f32 %v513, 1.442695
        %v515 = vpow.pop %v514
        %v516 = vsel %vm509, %v515, 0.0
        %517 = vadd.xlane.f32.xlu0 %v516
        %v518 = vpop.xlane.xlu0 %517
        %v519 = vlog2.pop %v518
        %v520 = vmul.f32 %v519, 0.6931472
        %v521 = vadd.f32 %v520, %v512
        %s522 = smul.u32 %s27, 8
        %s523 = sshra.s32 %s522, 3
        %s524 = sand.u32 %s522, 7
        %s525 = smul.u32 %s523, 3
        %s526 = smul.addr %s525, 4
        %s527 = scalar_lea.vmem %s1, %s526
        %v528 = vld [vmem:[%s527] sm:$0xff]
        %v529 = vld [vmem:[%s527 + $0x8] sm:$0xf]
        %v530 = vunpack.c.l.bf16 %v432
        %v531 = vunpack.c.h.bf16 %v432
        %v532 = vunpack.c.l.bf16 %v433
        %v533 = vunpack.c.l.bf16 %v528
        %v534 = vunpack.c.h.bf16 %v528
        %v535 = vunpack.c.l.bf16 %v529
        %v536 = vmul.f32 %v530, %v533
        %v537 = vmul.f32 %v531, %v534
        %v538 = vmul.f32 %v532, %v535
        %v539 = vadd.f32 %v536, %v537
        %v540 = vsel %vm463, %v538, 0.0
        %v541 = vadd.f32 %v539, %v540
        %542 = vadd.xlane.f32.xlu0 %v541
        %v543 = vpop.xlane.xlu0 %542
        %v544 = vsub.f32 %v521, %v543
        %vm545 = vcmask 7168
        %v546 = vsel %vm545, %v544, 0.0
        %547 = vadd.xlane.f32.xlu0 %v546
        %v548 = vpop.xlane.xlu0 %547
        %v549 = vrot.slane %v548, 4
        %v550 = vadd.f32 %v548, %v549
        %v551 = vrot.slane %v550, 2
        %v552 = vadd.f32 %v550, %v551
        %v553 = vrot.slane %v552, 1
        %v554 = vadd.f32 %v552, %v553
        %s555 = vtos %v554
        %v556 = vld [vmem:[%s417] sm:$0xff]
        %v557 = vld [vmem:[%s417 + $0x8] sm:$0xff]
        %v558 = vld [vmem:[%s423] sm:$0xff]
        %v559 = vld [vmem:[%s423 + $0x8] sm:$0xff]
        %v560 = vlaneseq
        %v561 = vand.u32 %v560, 127
        %562 = vset.pattern.permute.xlu0 0
        %563 = vperm.xlu0 %562, %v558
        %v564 = vpop.permute.xlu0 %563
        %565 = vset.pattern.permute.xlu0 0
        %566 = vperm.xlu0 %565, %v559
        %v567 = vpop.permute.xlu0 %566
        %vm568 = vcmp.eq.s32.totalorder %v561, %v564
        %vm569 = vcmp.eq.s32.totalorder %v561, %v567
        %v570 = vsel %vm568, %v556, 0.0
        %v571 = vsel %vm569, %v557, 0.0
        %v572 = vsel %vm509, %v570, 0.0
        %573 = vadd.xlane.f32.xlu0 %v572
        %v574 = vpop.xlane.xlu0 %573
        %v575 = vsel %vm509, %v571, 0.0
        %576 = vadd.xlane.f32.xlu0 %v575
        %v577 = vpop.xlane.xlu0 %576
        %v578 = vsel %vm509, %v556, -inf
        %579 = vmax.xlane.f32.xlu0 %v578
        %v580 = vpop.xlane.xlu0 %579
        %v581 = vsel %vm509, %v557, -inf
        %582 = vmax.xlane.f32.xlu0 %v581
        %v583 = vpop.xlane.xlu0 %582
        %v584 = vsub.f32 %v556, %v580
        %v585 = vsub.f32 %v557, %v583
        %v586 = vmul.f32 %v584, 1.442695
        %v587 = vpow.pop %v586
        %v588 = vmul.f32 %v585, 1.442695
        %v589 = vpow.pop %v588
        %v590 = vsel %vm509, %v587, 0.0
        %591 = vadd.xlane.f32.xlu0 %v590
        %v592 = vpop.xlane.xlu0 %591
        %v593 = vsel %vm509, %v589, 0.0
        %594 = vadd.xlane.f32.xlu0 %v593
        %v595 = vpop.xlane.xlu0 %594
        %v596 = vlog2.pop %v592
        %v597 = vmul.f32 %v596, 0.6931472
        %v598 = vlog2.pop %v595
        %v599 = vmul.f32 %v598, 0.6931472
        %v600 = vadd.f32 %v597, %v580
        %v601 = vadd.f32 %v599, %v583
        %v602 = vsub.f32 %v600, %v574
        %v603 = vsub.f32 %v601, %v577
        %v604 = vsel %vm545, %v602, 0.0
        %v605 = vsel %vm545, %v603, 0.0
        %v606 = vadd.f32 %v604, %v605
        %607 = vadd.xlane.f32.xlu0 %v606
        %v608 = vpop.xlane.xlu0 %607
        %v609 = vrot.slane %v608, 4
        %v610 = vadd.f32 %v608, %v609
        %v611 = vrot.slane %v610, 2
        %v612 = vadd.f32 %v610, %v611
        %v613 = vrot.slane %v612, 1
        %v614 = vadd.f32 %v612, %v613
        %s615 = vtos %v614
        %v616 = vld [vmem:[%s339] sm:$0xff]
        %v617 = vld [vmem:[%s339 + $0x8] sm:$0xff]
        %v618 = vld [vmem:[%s339 + $0x10] sm:$0xff]
        %v619 = vld [vmem:[%s339 + $0x18] sm:$0xff]
        %v620 = vld [vmem:[%s339 + $0x20] sm:$0xff]
        %v621 = vld [vmem:[%s339 + $0x28] sm:$0xff]
        %v622 = vsel %vm463, %v618, -inf
        %v623 = vmax.f32 %v616, %v622
        %v624 = vmax.f32 %v623, %v617
        %625 = vmax.xlane.f32.xlu0 %v624
        %v626 = vpop.xlane.xlu0 %625
        %v627 = vsel %vm463, %v621, -inf
        %v628 = vmax.f32 %v619, %v627
        %v629 = vmax.f32 %v628, %v620
        %630 = vmax.xlane.f32.xlu0 %v629
        %v631 = vpop.xlane.xlu0 %630
        %v632 = vsub.f32 %v616, %v626
        %v633 = vsub.f32 %v617, %v626
        %v634 = vsub.f32 %v618, %v626
        %v635 = vsub.f32 %v619, %v631
        %v636 = vsub.f32 %v620, %v631
        %v637 = vsub.f32 %v621, %v631
        %v638 = vmul.f32 %v632, 1.442695
        %v639 = vpow.pop %v638
        %v640 = vmul.f32 %v633, 1.442695
        %v641 = vpow.pop %v640
        %v642 = vmul.f32 %v634, 1.442695
        %v643 = vpow.pop %v642
        %v644 = vmul.f32 %v635, 1.442695
        %v645 = vpow.pop %v644
        %v646 = vmul.f32 %v636, 1.442695
        %v647 = vpow.pop %v646
        %v648 = vmul.f32 %v637, 1.442695
        %v649 = vpow.pop %v648
        %v650 = vadd.f32 %v639, %v641
        %v651 = vsel %vm463, %v643, 0.0
        %v652 = vadd.f32 %v650, %v651
        %653 = vadd.xlane.f32.xlu0 %v652
        %v654 = vpop.xlane.xlu0 %653
        %v655 = vadd.f32 %v645, %v647
        %v656 = vsel %vm463, %v649, 0.0
        %v657 = vadd.f32 %v655, %v656
        %658 = vadd.xlane.f32.xlu0 %v657
        %v659 = vpop.xlane.xlu0 %658
        %v660 = vrcp.pop %v654
        %v661 = vmul.f32 %v654, %v660
        %v662 = vsub.f32 1.0, %v661
        %v663 = vmul.f32 %v660, %v662
        %v664 = vadd.f32 %v660, %v663
        %vm665 = vweird.f32 %v654
        %vm666 = vweird.f32 %v660
        %vm667 = vmor %vm665, %vm666
        %v668 = vsel %vm667, %v660, %v664
        %v669 = vand.u32 2147483647, %v654
        %vm670 = vcmp.eq.f32.partialorder %v669, 8.507059e+37
        %v671 = vand.u32 %v654, 2147483648
        %v672 = vor.u32 1.1754944e-38, %v671
        %v673 = vsel %vm670, %v672, %v668
        %v674 = vmul.f32 1.0, %v673
        %v675 = vrcp.pop %v659
        %v676 = vmul.f32 %v659, %v675
        %v677 = vsub.f32 1.0, %v676
        %v678 = vmul.f32 %v675, %v677
        %v679 = vadd.f32 %v675, %v678
        %vm680 = vweird.f32 %v659
        %vm681 = vweird.f32 %v675
        %vm682 = vmor %vm680, %vm681
        %v683 = vsel %vm682, %v675, %v679
        %v684 = vand.u32 2147483647, %v659
        %vm685 = vcmp.eq.f32.partialorder %v684, 8.507059e+37
        %v686 = vand.u32 %v659, 2147483648
        %v687 = vor.u32 1.1754944e-38, %v686
        %v688 = vsel %vm685, %v687, %v683
        %v689 = vmul.f32 1.0, %v688
        %v690 = vmul.f32 %v639, %v674
        %v691 = vmul.f32 %v641, %v674
        %v692 = vmul.f32 %v643, %v674
        %v693 = vmul.f32 %v645, %v689
        %v694 = vmul.f32 %v647, %v689
        %v695 = vmul.f32 %v649, %v689
        %v696 = vld [vmem:[%s349] sm:$0xff]
        %v697 = vld [vmem:[%s349 + $0x8] sm:$0xff]
        %v698 = vld [vmem:[%s349 + $0x10] sm:$0xff]
        %v699 = vld [vmem:[%s349 + $0x18] sm:$0xff]
        %v700 = vld [vmem:[%s349 + $0x20] sm:$0xff]
        %v701 = vld [vmem:[%s349 + $0x28] sm:$0xff]
        %v702 = vsel %vm463, %v698, -inf
        %v703 = vmax.f32 %v696, %v702
        %v704 = vmax.f32 %v703, %v697
        %705 = vmax.xlane.f32.xlu0 %v704
        %v706 = vpop.xlane.xlu0 %705
        %v707 = vsel %vm463, %v701, -inf
        %v708 = vmax.f32 %v699, %v707
        %v709 = vmax.f32 %v708, %v700
        %710 = vmax.xlane.f32.xlu0 %v709
        %v711 = vpop.xlane.xlu0 %710
        %v712 = vsub.f32 %v696, %v706
        %v713 = vsub.f32 %v697, %v706
        %v714 = vsub.f32 %v698, %v706
        %v715 = vsub.f32 %v699, %v711
        %v716 = vsub.f32 %v700, %v711
        %v717 = vsub.f32 %v701, %v711
        %v718 = vmul.f32 %v712, 1.442695
        %v719 = vpow.pop %v718
        %v720 = vmul.f32 %v713, 1.442695
        %v721 = vpow.pop %v720
        %v722 = vmul.f32 %v714, 1.442695
        %v723 = vpow.pop %v722
        %v724 = vmul.f32 %v715, 1.442695
        %v725 = vpow.pop %v724
        %v726 = vmul.f32 %v716, 1.442695
        %v727 = vpow.pop %v726
        %v728 = vmul.f32 %v717, 1.442695
        %v729 = vpow.pop %v728
        %v730 = vadd.f32 %v719, %v721
        %v731 = vsel %vm463, %v723, 0.0
        %v732 = vadd.f32 %v730, %v731
        %733 = vadd.xlane.f32.xlu0 %v732
        %v734 = vpop.xlane.xlu0 %733
        %v735 = vadd.f32 %v725, %v727
        %v736 = vsel %vm463, %v729, 0.0
        %v737 = vadd.f32 %v735, %v736
        %738 = vadd.xlane.f32.xlu0 %v737
        %v739 = vpop.xlane.xlu0 %738
        %v740 = vrcp.pop %v734
        %v741 = vmul.f32 %v734, %v740
        %v742 = vsub.f32 1.0, %v741
        %v743 = vmul.f32 %v740, %v742
        %v744 = vadd.f32 %v740, %v743
        %vm745 = vweird.f32 %v734
        %vm746 = vweird.f32 %v740
        %vm747 = vmor %vm745, %vm746
        %v748 = vsel %vm747, %v740, %v744
        %v749 = vand.u32 2147483647, %v734
        %vm750 = vcmp.eq.f32.partialorder %v749, 8.507059e+37
        %v751 = vand.u32 %v734, 2147483648
        %v752 = vor.u32 1.1754944e-38, %v751
        %v753 = vsel %vm750, %v752, %v748
        %v754 = vmul.f32 1.0, %v753
        %v755 = vrcp.pop %v739
        %v756 = vmul.f32 %v739, %v755
        %v757 = vsub.f32 1.0, %v756
        %v758 = vmul.f32 %v755, %v757
        %v759 = vadd.f32 %v755, %v758
        %vm760 = vweird.f32 %v739
        %vm761 = vweird.f32 %v755
        %vm762 = vmor %vm760, %vm761
        %v763 = vsel %vm762, %v755, %v759
        %v764 = vand.u32 2147483647, %v739
        %vm765 = vcmp.eq.f32.partialorder %v764, 8.507059e+37
        %v766 = vand.u32 %v739, 2147483648
        %v767 = vor.u32 1.1754944e-38, %v766
        %v768 = vsel %vm765, %v767, %v763
        %v769 = vmul.f32 1.0, %v768
        %v770 = vmul.f32 %v719, %v754
        %v771 = vmul.f32 %v721, %v754
        %v772 = vmul.f32 %v723, %v754
        %v773 = vmul.f32 %v725, %v769
        %v774 = vmul.f32 %v727, %v769
        %v775 = vmul.f32 %v729, %v769
        %v776 = vsub.f32 %v690, %v770
        %v777 = vsub.f32 %v691, %v771
        %v778 = vsub.f32 %v692, %v772
        %v779 = vsub.f32 %v693, %v773
        %v780 = vsub.f32 %v694, %v774
        %v781 = vsub.f32 %v695, %v775
        %v782 = vand.u32 2147483647, %v776
        %v783 = vand.u32 2147483647, %v777
        %v784 = vand.u32 2147483647, %v778
        %v785 = vand.u32 2147483647, %v779
        %v786 = vand.u32 2147483647, %v780
        %v787 = vand.u32 2147483647, %v781
        %v788 = vadd.f32 %v782, %v783
        %v789 = vsel %vm463, %v784, 0.0
        %v790 = vadd.f32 %v788, %v789
        %791 = vadd.xlane.f32.xlu0 %v790
        %v792 = vpop.xlane.xlu0 %791
        %v793 = vadd.f32 %v785, %v786
        %v794 = vsel %vm463, %v787, 0.0
        %v795 = vadd.f32 %v793, %v794
        %796 = vadd.xlane.f32.xlu0 %v795
        %v797 = vpop.xlane.xlu0 %796
        %v798 = vld [vmem:[%s429] sm:$0xff]
        %v799 = vld [vmem:[%s429 + $0x8] sm:$0xff]
        %v800 = vmul.f32 %v798, 25000.0
        %v801 = vmul.f32 %v799, 25000.0
        %v802 = vmul.f32 %v792, %v800
        %v803 = vmul.f32 %v797, %v801
        %v804 = vsel %vm545, %v802, 0.0
        %v805 = vsel %vm545, %v803, 0.0
        %v806 = vadd.f32 %v804, %v805
        %807 = vadd.xlane.f32.xlu0 %v806
        %v808 = vpop.xlane.xlu0 %807
        %v809 = vrot.slane %v808, 4
        %v810 = vadd.f32 %v808, %v809
        %v811 = vrot.slane %v810, 2
        %v812 = vadd.f32 %v810, %v811
        %v813 = vrot.slane %v812, 1
        %v814 = vadd.f32 %v812, %v813
        %s815 = vtos %v814
        %v816 = vlaneseq
        %v817 = vshrl.u32 %v816, 7
        %vm818 = vcmp.eq.s32.totalorder %v817, 0
        %v819 = vstv %s555
        %v820 = vsel %vm818, %v819, 0.0
        %vm821 = vcmp.eq.s32.totalorder %v817, 1
        %v822 = vstv %s615
        %v823 = vsel %vm821, %v822, 0.0
        %v824 = vadd.f32 %v820, %v823
        %vm825 = vcmp.eq.s32.totalorder %v817, 2
        %v826 = vstv %s815
        %v827 = vsel %vm825, %v826, 0.0
        %v828 = vadd.f32 %v824, %v827
        %829 = vst [vmem:[%s405] sm:$0xff] %v828
        %s830 = sand.u32 %s212, 1
        %s831 = scalar_lea.sflag [#allocation4], %s830
        %s832 = sand.u32 %s212, 1
        %s833 = smul.addr %s832, 8
        %s834 = scalar_lea.vmem [#allocation7], %s833
        // Predicated region
        $region57: #{tpu_custom_call.1} parent=47 // pred_check
          %p835 = pneg %p222
        $region58: #{tpu_custom_call.1} parent=47 // pred_check_branch
          %837 = sbr.rel (%p835) target = $region60
        $region59: #{tpu_custom_call.1} parent=47 // pred_region
          %839 = vsyncadd %s831, 0
          %s840 = smul.addr %s27, 8
          %s841 = scalar_lea.hbm %s7, %s840
          %s843 = sshll.u32 %s834, 4
          %s844 = int_to_ptr.vmem [resolvable:$true] %s843
          %s845 = sshll.u32 %s841, 4
          %s846 = int_to_ptr.hbm [resolvable:$true] %s845
          %848 = dma.vmem_to_hbm [thread:$0]  %s844, 128, %s846, %s831
        $region60: #{tpu_custom_call.1} parent=47 // pred_fallthru
          _
      $region48: #{tpu_custom_call.1} parent=5 // pred_fallthru
        _
      %p849 = scmp.le.s32.totalorder 2, %s22
      // Predicated region
      $region61: #{tpu_custom_call.1} parent=5 // pred_check
        %p850 = pneg %p849
      $region62: #{tpu_custom_call.1} parent=5 // pred_check_branch
        %852 = sbr.rel (%p850) target = $region64
      $region63: #{tpu_custom_call.1} parent=5 // pred_region
        %s853 = ssub.s32 %s22, 2
        // Predicated region
        $region65: #{tpu_custom_call.1} parent=63 // pred_check
          %p854 = pneg %p228
        $region66: #{tpu_custom_call.1} parent=63 // pred_check_branch
          %856 = sbr.rel (%p854) target = $region68
        $region67: #{tpu_custom_call.1} parent=63 // pred_region
          %s857 = sand.u32 %s213, 1
          %s858 = scalar_lea.sflag [#allocation4], %s857
          %s859 = sand.u32 %s213, 1
          %s860 = smul.addr %s859, 8
          %s861 = scalar_lea.vmem [#allocation7], %s860
          %863 = dma.done %s858, 128
        $region68: #{tpu_custom_call.1} parent=63 // pred_fallthru
          _
      $region64: #{tpu_custom_call.1} parent=5 // pred_fallthru
        _
    $region6: #{tpu_custom_call.1} parent=1 // loop_footer
      %s26 = sadd.s32 1, %s22
    $region7: #{tpu_custom_call.1} parent=1 // loop_footer_branch
      %21 = sbr.rel target = $region3
    $region8: #{tpu_custom_call.1} parent=1 // loop_exit
      _
    %864 = vsyncpa [#allocation3], 1
    %s865 = scalar_lea.sflag [#allocation3], 1
    %866 = vsyncpa %s865, 1
    %867 = vsyncpa [#allocation6], 1
    %s868 = scalar_lea.sflag [#allocation6], 1
    %869 = vsyncpa %s868, 1
    %870 = vsyncpa [#allocation4], 1
    %s871 = scalar_lea.sflag [#allocation4], 1
    %872 = vsyncpa %s871, 1

</llo_original>
